<compile_context>
chip_gen: v7x
topology: tpu7x:2x2x1
jax: 0.10.0
libtpu: 0.0.40
codegen_flags: <defaults>
</compile_context>

<pallas_src>
import functools

import jax
import jax.numpy as jnp
from jax.experimental import pallas as pl
from jax.experimental.pallas import tpu as pltpu

BN_EPS = 1e-5       # PyTorch BatchNorm1d default eps
NORM_EPS = 1e-12    # PyTorch F.normalize default eps
LANE = 128
MiB = 1024 * 1024


def _cdiv(a, b):
    return -(-a // b)


def _round_up(x, m):
    return _cdiv(x, m) * m


def _pad2(a, rows, cols):
    return jnp.pad(a, ((0, rows - a.shape[0]), (0, cols - a.shape[1])))


_HAS_BUFFERED = hasattr(pl, "Buffered")


def _invariant_spec(block_shape, index_map, single_buffer):
    """BlockSpec for a grid-invariant operand; Buffered(1) halves its VMEM."""
    if single_buffer and _HAS_BUFFERED:
        try:
            return pl.BlockSpec(block_shape, index_map,
                                pipeline_mode=pl.Buffered(1))
        except TypeError:
            pass
    return pl.BlockSpec(block_shape, index_map)


def _vmem_budget_bytes():
    cap = 128 * MiB
    try:
        info = pltpu.get_tpu_info()
        cap = int(getattr(info, "vmem_capacity_bytes", cap) or cap)
    except Exception:
        pass
    return (cap * 3) // 4   # ~25% headroom on physical VMEM


# --------------------------------------------------------------------------
# Pass 1 (parallel over row tiles): h1 = x @ W1 (materialized in bf16) plus
# per-tile BatchNorm partial sums (sum, sum of squares) over the batch axis.
# --------------------------------------------------------------------------
def _h1_stats_kernel(x_ref, w1_ref, h1_ref, stats_ref):
    # Linear(D -> P) without bias: with training-mode BatchNorm (batch stats)
    # any per-feature constant is exactly cancelled by the mean subtraction.
    # TODO(synk): if this path is ever reused with running (eval-mode) BN
    # statistics, the pre-BN bias b1 must be reinstated.
    h1 = jnp.dot(x_ref[...], w1_ref[...],
                 preferred_element_type=jnp.float32)        # [TN, Pp] f32
    h1_ref[...] = h1.astype(h1_ref.dtype)
    s = jnp.sum(h1, axis=0, keepdims=True)                  # [1, Pp]
    sq = jnp.sum(h1 * h1, axis=0, keepdims=True)            # [1, Pp]
    stats_ref[...] = jnp.concatenate([s, sq], axis=0)[None, :, :]


# --------------------------------------------------------------------------
# Pass 2 (parallel over row tiles): BN(scale/shift) + ReLU + Linear(P->D)
# + L2 normalize + prototypes.
# --------------------------------------------------------------------------
def _cc_forward_kernel(h1_ref, scale_ref, shift_ref, w2_ref, b2_ref, wp_ref,
                       out_ref):
    mm_dtype = w2_ref.dtype
    h1 = h1_ref[...].astype(jnp.float32)

    # BatchNorm1d (batch stats folded into scale/shift) + ReLU, all f32.
    h3 = jnp.maximum(h1 * scale_ref[...] + shift_ref[...], 0.0)

    # Linear(P -> D)
    h4 = jnp.dot(h3.astype(mm_dtype), w2_ref[...],
                 preferred_element_type=jnp.float32) + b2_ref[...]

    # L2 normalize along dim=1: rsqrt(max(sum_sq, eps^2)) == 1/max(||h||, eps)
    sumsq = jnp.sum(h4 * h4, axis=1, keepdims=True)
    h5 = h4 * jax.lax.rsqrt(jnp.maximum(sumsq, NORM_EPS * NORM_EPS))

    # prototypes: Linear(D -> K), no bias
    out_ref[...] = jnp.dot(h5.astype(mm_dtype), wp_ref[...],
                           preferred_element_type=jnp.float32
                           ).astype(out_ref.dtype)


def _forward_impl(x, params, *, weight_dtype, row_tile, out_dtype,
                  single_buffer_weights):
    f32 = jnp.float32
    N, D = x.shape
    P = params["w1_t"].shape[1]
    K = params["wp_t"].shape[1]

    bw = jnp.dtype(weight_dtype).itemsize
    ob = jnp.dtype(out_dtype).itemsize
    sub = 16 if bw == 2 else 8                       # sublane packing of mm dtype

    Dp, Pp, Kp = _round_up(D, LANE), _round_up(P, LANE), _round_up(K, LANE)

    # Row tiling: even tile count (>1 whenever the batch allows) so both v7x
    # TensorCores get work on the "parallel" grid axis.
    tn_cap = max(sub, (row_tile // sub) * sub)
    num_tiles = _cdiv(N, tn_cap)
    if num_tiles == 1 and N > sub:
        num_tiles = 2
    elif num_tiles > 1 and num_tiles % 2 == 1:
        num_tiles += 1
    TN = _round_up(_cdiv(N, num_tiles), sub)
    Np = num_tiles * TN

    # Activations carried in the matmul dtype (halves x / h1 HBM traffic).
    # Zero-padded rows contribute nothing to the BN sums because there is no
    # pre-BN bias; padded lanes of gamma/beta are zero so dead lanes stay zero.
    xp = _pad2(x, Np, Dp).astype(weight_dtype)
    w1 = _pad2(params["w1_t"], Dp, Pp).astype(weight_dtype)
    w2 = _pad2(params["w2_t"], Pp, Dp).astype(weight_dtype)
    wp = _pad2(params["wp_t"], Dp, Kp).astype(weight_dtype)
    gamma = _pad2(params["gamma"].astype(f32), 1, Pp)
    beta = _pad2(params["beta"].astype(f32), 1, Pp)
    b2 = _pad2(params["b2"].astype(f32), 1, Dp)

    budget = _vmem_budget_bytes()
    w_bufs = 1 if (single_buffer_weights and _HAS_BUFFERED) else 2

    def _limit(need):
        return int(min(budget, max(32 * MiB, 2 * need)))

    inv_spec = functools.partial(_invariant_spec,
                                 single_buffer=single_buffer_weights)

    # ---- pass 1: x @ W1 (materialize h1) + per-tile BN partial sums --------
    p1_need = (2 * TN * Dp * bw + w_bufs * Dp * Pp * bw
               + 2 * TN * Pp * bw + 2 * 2 * Pp * 4 + 4 * TN * Pp * 4)
    h1, stats = pl.pallas_call(
        _h1_stats_kernel,
        out_shape=(jax.ShapeDtypeStruct((Np, Pp), weight_dtype),
                   jax.ShapeDtypeStruct((num_tiles, 2, Pp), f32)),
        grid_spec=pltpu.PrefetchScalarGridSpec(
            num_scalar_prefetch=0,
            grid=(num_tiles,),
            in_specs=[pl.BlockSpec((TN, Dp), lambda i: (i, 0)),
                      inv_spec((Dp, Pp), lambda i: (0, 0))],
            out_specs=(pl.BlockSpec((TN, Pp), lambda i: (i, 0)),
                       pl.BlockSpec((1, 2, Pp), lambda i: (i, 0, 0)))),
        compiler_params=pltpu.CompilerParams(
            dimension_semantics=("parallel",),
            vmem_limit_bytes=_limit(p1_need)),
        cost_estimate=pl.CostEstimate(
            flops=2 * Np * Dp * Pp,
            transcendentals=0,
            bytes_accessed=(Np * Dp + Dp * Pp + Np * Pp) * bw
                           + num_tiles * 2 * Pp * 4),
    )(xp, w1)

    # ---- finalize BN batch stats (tiny XLA op): BN(h) == h*scale + shift ---
    inv_n = jnp.float32(1.0 / N)
    sums = jnp.sum(stats[:, 0, :], axis=0)
    sqs = jnp.sum(stats[:, 1, :], axis=0)
    mean = sums * inv_n
    var = jnp.maximum(sqs * inv_n - mean * mean, 0.0)   # one-pass cancellation guard
    inv_std = jax.lax.rsqrt(var + BN_EPS)
    scale = (gamma[0] * inv_std)[None, :]
    shift = (beta[0] - mean * gamma[0] * inv_std)[None, :]

    # ---- pass 2: BN/ReLU + Linear(P->D) + l2norm + prototypes --------------
    p2_need = (2 * TN * Pp * bw
               + w_bufs * (Pp * Dp + Dp * Kp) * bw
               + w_bufs * (2 * Pp + Dp) * 4
               + 2 * TN * Kp * ob
               + 6 * TN * max(Pp, Dp, Kp) * 4)
    out_padded = pl.pallas_call(
        _cc_forward_kernel,
        out_shape=jax.ShapeDtypeStruct((Np, Kp), out_dtype),
        grid_spec=pltpu.PrefetchScalarGridSpec(
            num_scalar_prefetch=0,
            grid=(num_tiles,),
            in_specs=[pl.BlockSpec((TN, Pp), lambda i: (i, 0)),
                      inv_spec((1, Pp), lambda i: (0, 0)),
                      inv_spec((1, Pp), lambda i: (0, 0)),
                      inv_spec((Pp, Dp), lambda i: (0, 0)),
                      inv_spec((1, Dp), lambda i: (0, 0)),
                      inv_spec((Dp, Kp), lambda i: (0, 0))],
            out_specs=pl.BlockSpec((TN, Kp), lambda i: (i, 0))),
        compiler_params=pltpu.CompilerParams(
            dimension_semantics=("parallel",),
            vmem_limit_bytes=_limit(p2_need)),
        cost_estimate=pl.CostEstimate(
            flops=2 * Np * (Pp * Dp + Dp * Kp),
            transcendentals=Np,
            bytes_accessed=Np * Pp * bw + (Pp * Dp + Dp * Kp) * bw
                           + (2 * Pp + Dp) * 4 + Np * Kp * ob),
    )(h1, scale, shift, w2, b2, wp)

    return out_padded[:N, :K]


def category_contrastive_forward(x, params, *, weight_dtype=jnp.bfloat16,
                                 row_tile=512, out_dtype=jnp.float32):
    """x: [N, D] float32. params: dict of pre-transposed weights/biases."""
    kw = dict(weight_dtype=weight_dtype, row_tile=row_tile, out_dtype=out_dtype)
    try:
        return _forward_impl(x, params, single_buffer_weights=True, **kw)
    except Exception:
        # pl.Buffered(1) unsupported on this jax/libtpu -> retry with default
        # double-buffering of the grid-invariant operands.
        return _forward_impl(x, params, single_buffer_weights=False, **kw)


# --------------------------------------------------------------------------
# Parameters & references
# --------------------------------------------------------------------------
def init_params(key, input_dim, projector_dim, nmb_protos):
    """Deterministic synthetic parameters (shapes match the nn.Module)."""
    k1, k2, k3, k4, k5, k6, k7 = jax.random.split(key, 7)
    w1_t = jax.random.normal(k1, (input_dim, projector_dim), jnp.float32) * 0.1
    b1 = jax.random.normal(k2, (1, projector_dim), jnp.float32) * 0.01
    gamma = 1.0 + 0.1 * jax.random.normal(k6, (1, projector_dim), jnp.float32)
    beta = 0.05 * jax.random.normal(k7, (1, projector_dim), jnp.float32)
    w2_t = jax.random.normal(k3, (projector_dim, input_dim), jnp.float32) * 0.1
    b2 = jax.random.normal(k4, (1, input_dim), jnp.float32) * 0.01
    wp_t = jax.random.normal(k5, (input_dim, nmb_protos), jnp.float32) * 0.1
    return dict(w1_t=w1_t, b1=b1, gamma=gamma, beta=beta,
                w2_t=w2_t, b2=b2, wp_t=wp_t)


def reference_forward_quantized(x, p, mm_dtype=jnp.bfloat16):
    """Mirrors the kernel numerics (bf16 operands, f32 accum, b1 dropped,
    h1 round-tripped through bf16 between the two passes)."""
    def mm(a, b):
        return jnp.dot(a.astype(mm_dtype), b.astype(mm_dtype),
                       preferred_element_type=jnp.float32)
    h1 = mm(x, p["w1_t"])
    mean = jnp.mean(h1, axis=0, keepdims=True)
    var = jnp.maximum(jnp.mean(h1 * h1, axis=0, keepdims=True) - mean * mean, 0.0)
    inv_std = jax.lax.rsqrt(var + BN_EPS)
    scale = p["gamma"] * inv_std
    shift = p["beta"] - mean * scale
    h1q = h1.astype(mm_dtype).astype(jnp.float32)
    h3 = jnp.maximum(h1q * scale + shift, 0.0)
    h4 = mm(h3, p["w2_t"]) + p["b2"]
    sumsq = jnp.sum(h4 * h4, axis=1, keepdims=True)
    h5 = h4 * jax.lax.rsqrt(jnp.maximum(sumsq, NORM_EPS * NORM_EPS))
    return mm(h5, p["wp_t"])


def reference_forward_f32(x, p):
    """Faithful f32 emulation of the PyTorch module (training-mode BN, with b1)."""
    h1 = x @ p["w1_t"] + p["b1"]
    mean = jnp.mean(h1, axis=0, keepdims=True)
    var = jnp.mean((h1 - mean) ** 2, axis=0, keepdims=True)
    h2 = p["gamma"] * (h1 - mean) * jax.lax.rsqrt(var + BN_EPS) + p["beta"]
    h3 = jnp.maximum(h2, 0.0)
    h4 = h3 @ p["w2_t"] + p["b2"]
    norm = jnp.sqrt(jnp.sum(h4 * h4, axis=1, keepdims=True))
    h5 = h4 / jnp.maximum(norm, NORM_EPS)
    return h5 @ p["wp_t"]


if __name__ == "__main__":
    # Module-consistent small shapes: batch=8, hidden_dim=32,
    # projection_dim=64, nmb_protos=16.
    N, D, P, K = 8, 32, 64, 16
    key = jax.random.PRNGKey(0)
    kx, kp = jax.random.split(key)
    x = jax.random.normal(kx, (N, D), jnp.float32)
    params = init_params(kp, D, P, K)

    out = category_contrastive_forward(x, params)
    out = jax.block_until_ready(out)
    assert out.shape == (N, K)

    # Tight check vs a reference with identical numerics.
    ref_q = reference_forward_quantized(x, params)
    assert jnp.allclose(out, ref_q, atol=2e-3, rtol=2e-3), \
        "mismatch vs bf16-matched JAX reference"

    # Loose check vs the faithful full-f32 PyTorch-equivalent forward.
    ref_f32 = reference_forward_f32(x, params)
    assert jnp.allclose(out, ref_f32, atol=5e-2, rtol=5e-2), \
        "mismatch vs f32 JAX reference"

    print("KERNEL_OK")
</pallas_src>

<mosaic_0001>
module attributes {stable_mosaic.version = 11 : i64} {
  func.func @_h1_stats_kernel(%arg0: i32, %arg1: memref<16x128xbf16, #tpu.memory_space<vmem>>, %arg2: memref<128x128xbf16, #tpu.memory_space<vmem>>, %arg3: memref<16x128xbf16, #tpu.memory_space<vmem>>, %arg4: memref<1x2x128xf32, #tpu.memory_space<vmem>>) attributes {dimension_semantics = [#tpu.dimension_semantics<parallel>], iteration_bounds = array<i64: 1>, scalar_prefetch = 0 : i64, scratch_operands = 0 : i64, tpu.core_type = #tpu.core_type<tc>, window_params = [{transform_indices = @transform_0, window_bounds = array<i64: 16, 128>}, {pipeline_mode = #tpu.pipeline_mode<synchronous>, transform_indices = @transform_1, window_bounds = array<i64: 128, 128>}, {transform_indices = @transform_2, window_bounds = array<i64: 16, 128>}, {transform_indices = @transform_3, window_bounds = array<i64: 1, 2, 128>}]} {
    %c0 = arith.constant 0 : index
    %c0_0 = arith.constant 0 : index
    %0 = vector.load %arg1[%c0, %c0_0] : memref<16x128xbf16, #tpu.memory_space<vmem>>, vector<16x128xbf16>
    %c0_1 = arith.constant 0 : index
    %c0_2 = arith.constant 0 : index
    %1 = vector.load %arg2[%c0_1, %c0_2] : memref<128x128xbf16, #tpu.memory_space<vmem>>, vector<128x128xbf16>
    %cst = arith.constant dense<0.000000e+00> : vector<16x128xf32>
    %2 = tpu.matmul %0, %1, %cst {dimension_numbers = #tpu.dot_dimension_numbers<[1], [0], [0], [1], [0, 0, 1, 1], [], []>} : vector<16x128xbf16>, vector<128x128xbf16>, vector<16x128xf32> -> vector<16x128xf32>
    %3 = arith.truncf %2 : vector<16x128xf32> to vector<16x128xbf16>
    %c0_3 = arith.constant 0 : index
    %c0_4 = arith.constant 0 : index
    %4 = vector.load %arg3[%c0_3, %c0_4] : memref<16x128xbf16, #tpu.memory_space<vmem>>, vector<16x128xbf16>
    tpu.vector_store %arg3[%c0_3, %c0_4], %3 {strides = array<i32>} : memref<16x128xbf16, #tpu.memory_space<vmem>>, vector<16x128xbf16>,
    %cst_5 = arith.constant dense<0.000000e+00> : vector<128xf32>
    %5 = vector.multi_reduction <add>, %2, %cst_5 [0] : vector<16x128xf32> to vector<128xf32>
    %6 = vector.shape_cast %5 : vector<128xf32> to vector<1x128xf32>
    %7 = arith.mulf %2, %2 : vector<16x128xf32>
    %cst_6 = arith.constant dense<0.000000e+00> : vector<128xf32>
    %8 = vector.multi_reduction <add>, %7, %cst_6 [0] : vector<16x128xf32> to vector<128xf32>
    %9 = vector.shape_cast %8 : vector<128xf32> to vector<1x128xf32>
    %10 = tpu.concatenate %6, %9 in 0 : vector<1x128xf32>, vector<1x128xf32> -> vector<2x128xf32>
    %11 = vector.shape_cast %10 : vector<2x128xf32> to vector<1x2x128xf32>
    %c0_7 = arith.constant 0 : index
    %c0_8 = arith.constant 0 : index
    %c0_9 = arith.constant 0 : index
    %12 = vector.load %arg4[%c0_7, %c0_8, %c0_9] : memref<1x2x128xf32, #tpu.memory_space<vmem>>, vector<1x2x128xf32>
    tpu.vector_store %arg4[%c0_7, %c0_8, %c0_9], %11 {strides = array<i32>} : memref<1x2x128xf32, #tpu.memory_space<vmem>>, vector<1x2x128xf32>,
    return
  }
  func.func @transform_0(%arg0: i32) -> (i32, i32) {
    %c0_i32 = arith.constant 0 : i32
    %c0_i32_0 = arith.constant 0 : i32
    return %arg0, %c0_i32 : i32, i32
  }
  func.func @transform_1(%arg0: i32) -> (i32, i32) {
    %c0_i32 = arith.constant 0 : i32
    %c0_i32_0 = arith.constant 0 : i32
    %c0_i32_1 = arith.constant 0 : i32
    return %c0_i32, %c0_i32_0 : i32, i32
  }
  func.func @transform_2(%arg0: i32) -> (i32, i32) {
    %c0_i32 = arith.constant 0 : i32
    %c0_i32_0 = arith.constant 0 : i32
    return %arg0, %c0_i32 : i32, i32
  }
  func.func @transform_3(%arg0: i32) -> (i32, i32, i32) {
    %c0_i32 = arith.constant 0 : i32
    %c0_i32_0 = arith.constant 0 : i32
    %c0_i32_1 = arith.constant 0 : i32
    return %arg0, %c0_i32, %c0_i32_0 : i32, i32, i32
  }
}

module attributes {stable_mosaic.version = 11 : i64} {
  func.func @_h1_stats_kernel(%arg0: i32, %arg1: memref<16x128xbf16, #tpu.memory_space<vmem>>, %arg2: memref<128x128xbf16, #tpu.memory_space<vmem>>, %arg3: memref<16x128xbf16, #tpu.memory_space<vmem>>, %arg4: memref<1x2x128xf32, #tpu.memory_space<vmem>>) attributes {dimension_semantics = [#tpu.dimension_semantics<parallel>], iteration_bounds = array<i64: 1>, scalar_prefetch = 0 : i64, scratch_operands = 0 : i64, tpu.core_type = #tpu.core_type<tc>, window_params = [{transform_indices = @transform_0, window_bounds = array<i64: 16, 128>}, {pipeline_mode = #tpu.pipeline_mode<synchronous>, transform_indices = @transform_1, window_bounds = array<i64: 128, 128>}, {transform_indices = @transform_2, window_bounds = array<i64: 16, 128>}, {transform_indices = @transform_3, window_bounds = array<i64: 1, 2, 128>}]} {
    %c0 = arith.constant 0 : index
    %c0_0 = arith.constant 0 : index
    %0 = vector.load %arg1[%c0, %c0_0] : memref<16x128xbf16, #tpu.memory_space<vmem>>, vector<16x128xbf16>
    %c0_1 = arith.constant 0 : index
    %c0_2 = arith.constant 0 : index
    %1 = vector.load %arg2[%c0_1, %c0_2] : memref<128x128xbf16, #tpu.memory_space<vmem>>, vector<128x128xbf16>
    %cst = arith.constant dense<0.000000e+00> : vector<16x128xf32>
    %2 = tpu.matmul %0, %1, %cst {dimension_numbers = #tpu.dot_dimension_numbers<[1], [0], [0], [1], [0, 0, 1, 1], [], []>} : vector<16x128xbf16>, vector<128x128xbf16>, vector<16x128xf32> -> vector<16x128xf32>
    %3 = arith.truncf %2 : vector<16x128xf32> to vector<16x128xbf16>
    %c0_3 = arith.constant 0 : index
    %c0_4 = arith.constant 0 : index
    %4 = vector.load %arg3[%c0_3, %c0_4] : memref<16x128xbf16, #tpu.memory_space<vmem>>, vector<16x128xbf16>
    tpu.vector_store %arg3[%c0_3, %c0_4], %3 {strides = array<i32>} : memref<16x128xbf16, #tpu.memory_space<vmem>>, vector<16x128xbf16>,
    %cst_5 = arith.constant dense<0.000000e+00> : vector<128xf32>
    %5 = vector.multi_reduction <add>, %2, %cst_5 [0] : vector<16x128xf32> to vector<128xf32>
    %6 = vector.shape_cast %5 : vector<128xf32> to vector<1x128xf32>
    %7 = arith.mulf %2, %2 : vector<16x128xf32>
    %cst_6 = arith.constant dense<0.000000e+00> : vector<128xf32>
    %8 = vector.multi_reduction <add>, %7, %cst_6 [0] : vector<16x128xf32> to vector<128xf32>
    %9 = vector.shape_cast %8 : vector<128xf32> to vector<1x128xf32>
    %10 = tpu.concatenate %6, %9 in 0 : vector<1x128xf32>, vector<1x128xf32> -> vector<2x128xf32>
    %11 = vector.shape_cast %10 : vector<2x128xf32> to vector<1x2x128xf32>
    %c0_7 = arith.constant 0 : index
    %c0_8 = arith.constant 0 : index
    %c0_9 = arith.constant 0 : index
    %12 = vector.load %arg4[%c0_7, %c0_8, %c0_9] : memref<1x2x128xf32, #tpu.memory_space<vmem>>, vector<1x2x128xf32>
    tpu.vector_store %arg4[%c0_7, %c0_8, %c0_9], %11 {strides = array<i32>} : memref<1x2x128xf32, #tpu.memory_space<vmem>>, vector<1x2x128xf32>,
    return
  }
  func.func @transform_0(%arg0: i32) -> (i32, i32) {
    %c0_i32 = arith.constant 0 : i32
    %c0_i32_0 = arith.constant 0 : i32
    return %arg0, %c0_i32 : i32, i32
  }
  func.func @transform_1(%arg0: i32) -> (i32, i32) {
    %c0_i32 = arith.constant 0 : i32
    %c0_i32_0 = arith.constant 0 : i32
    %c0_i32_1 = arith.constant 0 : i32
    return %c0_i32, %c0_i32_0 : i32, i32
  }
  func.func @transform_2(%arg0: i32) -> (i32, i32) {
    %c0_i32 = arith.constant 0 : i32
    %c0_i32_0 = arith.constant 0 : i32
    return %arg0, %c0_i32 : i32, i32
  }
  func.func @transform_3(%arg0: i32) -> (i32, i32, i32) {
    %c0_i32 = arith.constant 0 : i32
    %c0_i32_0 = arith.constant 0 : i32
    %c0_i32_1 = arith.constant 0 : i32
    return %arg0, %c0_i32, %c0_i32_0 : i32, i32, i32
  }
}

</mosaic_0001>

<llo_original>
// kernel: tpu_custom_call.1
$region0: #{tpu_custom_call.1}
  #allocation0 [shape = 'u32[]', space=smem, size = 0x4, offset = 0x4, fixed_abs, tag = 'smem constant byte address 0x4 - core index']
  #allocation1 [shape = 'u32[144,128]{1,0:T(1,128)}', space=vmem, size = 0x12000, scoped, tag = 'internal scratch']
  %s0 = inlined_call_operand.hbm [shape: bf16[16,128], index: 0, kind: input, shape index: {}]
  %s1 = inlined_call_operand.hbm [shape: bf16[128,128], index: 1, kind: input, shape index: {}]
  %s2 = inlined_call_operand.hbm [shape: bf16[16,128], index: 2, kind: output, shape index: {0}]
  %s3 = inlined_call_operand.hbm [shape: f32[1,2,128], index: 3, kind: output, shape index: {1}]
  %4 = xla_tuple %s2, %s3
  %s5 = sld [smem:[#allocation0]]
  $region34: #{tpu_custom_call.1} parent=0
    _
  %s7 = ssub.s32 1, %s5
  %s8 = scalar_select 0, %s7, %s5
  $region1: #{tpu_custom_call.1} parent=0
    #allocation2 [shape = 'u8[4096]{0}', space=vmem, size = 0x1000, scoped, tag = 'input window, operand 0, single buffered']
    #allocation3 [shape = 's32[1]{0}', space=sflag, size = 0x4, scoped, tag = 'scoped memory for tpu_custom_call.1']
    #allocation4 [shape = 's32[1]{0}', space=sflag, size = 0x4, scoped, tag = 'scoped memory for tpu_custom_call.1']
    #allocation5 [shape = 'u8[32768]{0}', space=vmem, size = 0x8000, scoped, tag = 'input window, operand 1, single buffered']
    #allocation6 [shape = 's32[1]{0}', space=sflag, size = 0x4, scoped, tag = 'scoped memory for tpu_custom_call.1']
    #allocation7 [shape = 'u8[4096]{0}', space=vmem, size = 0x1000, scoped, tag = 'output window, operand 0, single buffered']
    #allocation8 [shape = 'u8[1024]{0}', space=vmem, size = 0x400, scoped, tag = 'output window, operand 1, single buffered']
    #allocation9 [shape = 's32[1]{0}', space=sflag, size = 0x4, scoped, tag = 'scoped memory for tpu_custom_call.1']
    %9 = vsyncpa [#allocation3], 0
    %10 = vsyncpa [#allocation6], 0
    %11 = vsyncpa [#allocation4], 0
    %12 = vsyncpa [#allocation9], 0
    // Predicated region
    $region2: #{tpu_custom_call.1} parent=1 // pred_check
      _
    $region3: #{tpu_custom_call.1} parent=1 // pred_check_branch
      %14 = sbr.rel (0) target = $region5
    $region4: #{tpu_custom_call.1} parent=1 // pred_region
      %s16 = ssub.s32 128, 128
      %17 = vsyncadd [#allocation3], %s16
      %s18 = sshll.u32 [#allocation2], 4
      %s19 = int_to_ptr.vmem [resolvable:$true] %s18
      %24 = dma.hbm_to_vmem [thread:$0]  %s0, 128, %s19, [#allocation3], 64, 64, 4
    $region5: #{tpu_custom_call.1} parent=1 // pred_fallthru
      _
    // Predicated region
    $region6: #{tpu_custom_call.1} parent=1 // pred_check
      _
    $region7: #{tpu_custom_call.1} parent=1 // pred_check_branch
      %26 = sbr.rel (0) target = $region9
    $region8: #{tpu_custom_call.1} parent=1 // pred_region
      %s28 = ssub.s32 1024, 1024
      %29 = vsyncadd [#allocation6], %s28
      %s30 = sshll.u32 [#allocation5], 4
      %s31 = int_to_ptr.vmem [resolvable:$true] %s30
      %36 = dma.hbm_to_vmem [thread:$0]  %s1, 1024, %s31, [#allocation6], 64, 64, 4
    $region9: #{tpu_custom_call.1} parent=1 // pred_fallthru
      _
    // Predicated region
    $region10: #{tpu_custom_call.1} parent=1 // pred_check
      _
    $region11: #{tpu_custom_call.1} parent=1 // pred_check_branch
      %38 = sbr.rel (0) target = $region13
    $region12: #{tpu_custom_call.1} parent=1 // pred_region
      %39 = dma.done [#allocation3], 128
    $region13: #{tpu_custom_call.1} parent=1 // pred_fallthru
      _
    // Predicated region
    $region14: #{tpu_custom_call.1} parent=1 // pred_check
      _
    $region15: #{tpu_custom_call.1} parent=1 // pred_check_branch
      %41 = sbr.rel (0) target = $region17
    $region16: #{tpu_custom_call.1} parent=1 // pred_region
      %42 = dma.done [#allocation6], 1024
    $region17: #{tpu_custom_call.1} parent=1 // pred_fallthru
      _
    %v44 = vld [vmem:[#allocation2] sm:$0xf]
    %v45 = vld [vmem:[#allocation2 + $0x4] sm:$0xf]
    %v46 = vld [vmem:[#allocation5] sm:$0xf]
    %v47 = vld [vmem:[#allocation5 + $0x4] sm:$0xf]
    %v48 = vld [vmem:[#allocation5 + $0x8] sm:$0xf]
    %v49 = vld [vmem:[#allocation5 + $0xc] sm:$0xf]
    %v50 = vld [vmem:[#allocation5 + $0x10] sm:$0xf]
    %v51 = vld [vmem:[#allocation5 + $0x14] sm:$0xf]
    %v52 = vld [vmem:[#allocation5 + $0x18] sm:$0xf]
    %v53 = vld [vmem:[#allocation5 + $0x1c] sm:$0xf]
    %v54 = vld [vmem:[#allocation5 + $0x20] sm:$0xf]
    %v55 = vld [vmem:[#allocation5 + $0x24] sm:$0xf]
    %v56 = vld [vmem:[#allocation5 + $0x28] sm:$0xf]
    %v57 = vld [vmem:[#allocation5 + $0x2c] sm:$0xf]
    %v58 = vld [vmem:[#allocation5 + $0x30] sm:$0xf]
    %v59 = vld [vmem:[#allocation5 + $0x34] sm:$0xf]
    %v60 = vld [vmem:[#allocation5 + $0x38] sm:$0xf]
    %v61 = vld [vmem:[#allocation5 + $0x3c] sm:$0xf]
    %v64 = vunpack.c.l.b16 %v44
    %v65 = vunpack.c.l.b16 %v45
    %v66 = vpack.c.b16 %v65, %v64
    %v84 = vunpack.c.l.b16 %v46
    %v85 = vunpack.c.l.b16 %v47
    %v86 = vunpack.c.l.b16 %v48
    %v87 = vunpack.c.l.b16 %v49
    %v88 = vunpack.c.l.b16 %v50
    %v89 = vunpack.c.l.b16 %v51
    %v90 = vunpack.c.l.b16 %v52
    %v91 = vunpack.c.l.b16 %v53
    %v92 = vunpack.c.l.b16 %v54
    %v93 = vunpack.c.l.b16 %v55
    %v94 = vunpack.c.l.b16 %v56
    %v95 = vunpack.c.l.b16 %v57
    %v96 = vunpack.c.l.b16 %v58
    %v97 = vunpack.c.l.b16 %v59
    %v98 = vunpack.c.l.b16 %v60
    %v99 = vunpack.c.l.b16 %v61
    %v100 = vpack.c.b16 %v85, %v84
    %v101 = vpack.c.b16 %v87, %v86
    %v102 = vpack.c.b16 %v89, %v88
    %v103 = vpack.c.b16 %v91, %v90
    %v104 = vpack.c.b16 %v93, %v92
    %v105 = vpack.c.b16 %v95, %v94
    %v106 = vpack.c.b16 %v97, %v96
    %v107 = vpack.c.b16 %v99, %v98
    %116 = vmatprep.subr.bf16.mxu0 0
    %117 = vmatpush1.bf16.msra.mxu0 %v100
    %118 = vmatprep.subr.bf16.mxu0 0
    %119 = vmatpush1.bf16.msra.mxu0 %v101
    %120 = vmatprep.subr.bf16.mxu0 0
    %121 = vmatpush1.bf16.msra.mxu0 %v102
    %122 = vmatprep.subr.bf16.mxu0 0
    %123 = vmatpush1.bf16.msra.mxu0 %v103
    %124 = vmatprep.subr.bf16.mxu0 0
    %125 = vmatpush1.bf16.msra.mxu0 %v104
    %126 = vmatprep.subr.bf16.mxu0 0
    %127 = vmatpush1.bf16.msra.mxu0 %v105
    %128 = vmatprep.subr.bf16.mxu0 0
    %129 = vmatpush1.bf16.msra.mxu0 %v106
    %130 = vmatprep.subr.bf16.mxu0 0
    %131 = vmatpush1.bf16.msra.mxu0 %v107
    %132 = vmatprep.subr.bf16.mxu0 0
    %133 = vmatpush1.bf16.msra.mxu0 0
    %134 = vmatprep.subr.bf16.mxu0 0
    %135 = vmatpush1.bf16.msra.mxu0 0
    %136 = vmatprep.subr.bf16.mxu0 0
    %137 = vmatpush1.bf16.msra.mxu0 0
    %138 = vmatprep.subr.bf16.mxu0 0
    %139 = vmatpush1.bf16.msra.mxu0 0
    %140 = vmatprep.subr.bf16.mxu0 0
    %141 = vmatpush1.bf16.msra.mxu0 0
    %142 = vmatprep.subr.bf16.mxu0 0
    %143 = vmatpush1.bf16.msra.mxu0 0
    %144 = vmatprep.subr.bf16.mxu0 0
    %145 = vmatpush1.bf16.msra.mxu0 0
    %146 = vmatprep.subr.bf16.mxu0 0
    %147 = vmatpush1.bf16.msra.mxu0 0
    %148 = vmatprep.mubr.bf16.mxu0 0
    %149 = vmatmul.mubr.bf16.gmra.mrb[0].mxu0 %v66
    %v150 = vpop.f32.mrb[0].mxu0
    %v151 = vadd.f32 0.0, %v150
    %v152 = vpop.f32.mrb[0].mxu0
    %v153 = vpop.f32.mrb[0].mxu0
    %v154 = vadd.f32 0.0, %v153
    %v155 = vpop.f32.mrb[0].mxu0
    %156 = vdwg.mxu0
    %v157 = vpack.c.bf16 %v154, %v151
    %v159 = vunpack.c.l.b16 %v157
    %v160 = vunpack.c.h.b16 %v157
    %v161 = vpack.c.b16 %v159, %v159
    %v162 = vpack.c.b16 %v160, %v160
    %165 = vst [vmem:[#allocation7] sm:$0xf] %v161
    %166 = vst [vmem:[#allocation7 + $0x4] sm:$0xf] %v162
    %v167 = vadd.f32 %v151, %v154
    %v168 = vrot.slane %v167, 4
    %v169 = vadd.f32 %v167, %v168
    %v170 = vrot.slane %v169, 2
    %v171 = vadd.f32 %v169, %v170
    %v172 = vrot.slane %v171, 1
    %v173 = vadd.f32 %v171, %v172
    %v174 = vmul.f32 %v151, %v151
    %v175 = vmul.f32 %v154, %v154
    %v176 = vadd.f32 %v174, %v175
    %v177 = vrot.slane %v176, 4
    %v178 = vadd.f32 %v176, %v177
    %v179 = vrot.slane %v178, 2
    %v180 = vadd.f32 %v178, %v179
    %v181 = vrot.slane %v180, 1
    %v182 = vadd.f32 %v180, %v181
    %vm183 = vcmask 1040384
    %v184 = vsel %vm183, %v173, %v182
    %185 = vst [vmem:[#allocation8] sm:$0x3] %v184
    // Predicated region
    $region18: #{tpu_custom_call.1} parent=1 // pred_check
      _
    $region19: #{tpu_custom_call.1} parent=1 // pred_check_branch
      %187 = sbr.rel (0) target = $region21
    $region20: #{tpu_custom_call.1} parent=1 // pred_region
      %s189 = ssub.s32 128, 128
      %190 = vsyncadd [#allocation4], %s189
      %s191 = sshll.u32 [#allocation7], 4
      %s192 = int_to_ptr.vmem [resolvable:$true] %s191
      %197 = dma.vmem_to_hbm [thread:$0]  %s192, 128, %s2, [#allocation4], 64, 64, 4
    $region21: #{tpu_custom_call.1} parent=1 // pred_fallthru
      _
    // Predicated region
    $region22: #{tpu_custom_call.1} parent=1 // pred_check
      _
    $region23: #{tpu_custom_call.1} parent=1 // pred_check_branch
      %199 = sbr.rel (0) target = $region25
    $region24: #{tpu_custom_call.1} parent=1 // pred_region
      %s201 = ssub.s32 32, 32
      %202 = vsyncadd [#allocation9], %s201
      %s204 = sshll.u32 [#allocation8], 4
      %s205 = int_to_ptr.vmem [resolvable:$true] %s204
      %207 = dma.vmem_to_hbm [thread:$0]  %s205, 32, %s3, [#allocation9]
    $region25: #{tpu_custom_call.1} parent=1 // pred_fallthru
      _
    // Predicated region
    $region26: #{tpu_custom_call.1} parent=1 // pred_check
      _
    $region27: #{tpu_custom_call.1} parent=1 // pred_check_branch
      %209 = sbr.rel (0) target = $region29
    $region28: #{tpu_custom_call.1} parent=1 // pred_region
      %210 = dma.done [#allocation4], 128
    $region29: #{tpu_custom_call.1} parent=1 // pred_fallthru
      _
    // Predicated region
    $region30: #{tpu_custom_call.1} parent=1 // pred_check
      _
    $region31: #{tpu_custom_call.1} parent=1 // pred_check_branch
      %212 = sbr.rel (0) target = $region33
    $region32: #{tpu_custom_call.1} parent=1 // pred_region
      %213 = dma.done [#allocation9], 32
    $region33: #{tpu_custom_call.1} parent=1 // pred_fallthru
      _
    %214 = vsyncpa [#allocation3], 1
    %215 = vsyncpa [#allocation6], 1
    %216 = vsyncpa [#allocation4], 1
    %217 = vsyncpa [#allocation9], 1

// kernel: tpu_custom_call.1
$region0: #{tpu_custom_call.1}
  #allocation0 [shape = 'u32[]', space=smem, size = 0x4, offset = 0x4, fixed_abs, tag = 'smem constant byte address 0x4 - core index']
  #allocation1 [shape = 'u32[144,128]{1,0:T(1,128)}', space=vmem, size = 0x12000, scoped, tag = 'internal scratch']
  %s0 = inlined_call_operand.hbm [shape: bf16[16,128], index: 0, kind: input, shape index: {}]
  %s1 = inlined_call_operand.hbm [shape: bf16[128,128], index: 1, kind: input, shape index: {}]
  %s2 = inlined_call_operand.hbm [shape: bf16[16,128], index: 2, kind: output, shape index: {0}]
  %s3 = inlined_call_operand.hbm [shape: f32[1,2,128], index: 3, kind: output, shape index: {1}]
  %4 = xla_tuple %s2, %s3
  %s5 = sld [smem:[#allocation0]]
  $region34: #{tpu_custom_call.1} parent=0
    _
  %s7 = ssub.s32 1, %s5
  %s8 = scalar_select 0, %s7, %s5
  $region1: #{tpu_custom_call.1} parent=0
    #allocation2 [shape = 'u8[4096]{0}', space=vmem, size = 0x1000, scoped, tag = 'input window, operand 0, single buffered']
    #allocation3 [shape = 's32[1]{0}', space=sflag, size = 0x4, scoped, tag = 'scoped memory for tpu_custom_call.1']
    #allocation4 [shape = 's32[1]{0}', space=sflag, size = 0x4, scoped, tag = 'scoped memory for tpu_custom_call.1']
    #allocation5 [shape = 'u8[32768]{0}', space=vmem, size = 0x8000, scoped, tag = 'input window, operand 1, single buffered']
    #allocation6 [shape = 's32[1]{0}', space=sflag, size = 0x4, scoped, tag = 'scoped memory for tpu_custom_call.1']
    #allocation7 [shape = 'u8[4096]{0}', space=vmem, size = 0x1000, scoped, tag = 'output window, operand 0, single buffered']
    #allocation8 [shape = 'u8[1024]{0}', space=vmem, size = 0x400, scoped, tag = 'output window, operand 1, single buffered']
    #allocation9 [shape = 's32[1]{0}', space=sflag, size = 0x4, scoped, tag = 'scoped memory for tpu_custom_call.1']
    %9 = vsyncpa [#allocation3], 0
    %10 = vsyncpa [#allocation6], 0
    %11 = vsyncpa [#allocation4], 0
    %12 = vsyncpa [#allocation9], 0
    // Predicated region
    $region2: #{tpu_custom_call.1} parent=1 // pred_check
      _
    $region3: #{tpu_custom_call.1} parent=1 // pred_check_branch
      %14 = sbr.rel (0) target = $region5
    $region4: #{tpu_custom_call.1} parent=1 // pred_region
      %s16 = ssub.s32 128, 128
      %17 = vsyncadd [#allocation3], %s16
      %s18 = sshll.u32 [#allocation2], 4
      %s19 = int_to_ptr.vmem [resolvable:$true] %s18
      %24 = dma.hbm_to_vmem [thread:$0]  %s0, 128, %s19, [#allocation3], 64, 64, 4
    $region5: #{tpu_custom_call.1} parent=1 // pred_fallthru
      _
    // Predicated region
    $region6: #{tpu_custom_call.1} parent=1 // pred_check
      _
    $region7: #{tpu_custom_call.1} parent=1 // pred_check_branch
      %26 = sbr.rel (0) target = $region9
    $region8: #{tpu_custom_call.1} parent=1 // pred_region
      %s28 = ssub.s32 1024, 1024
      %29 = vsyncadd [#allocation6], %s28
      %s30 = sshll.u32 [#allocation5], 4
      %s31 = int_to_ptr.vmem [resolvable:$true] %s30
      %36 = dma.hbm_to_vmem [thread:$0]  %s1, 1024, %s31, [#allocation6], 64, 64, 4
    $region9: #{tpu_custom_call.1} parent=1 // pred_fallthru
      _
    // Predicated region
    $region10: #{tpu_custom_call.1} parent=1 // pred_check
      _
    $region11: #{tpu_custom_call.1} parent=1 // pred_check_branch
      %38 = sbr.rel (0) target = $region13
    $region12: #{tpu_custom_call.1} parent=1 // pred_region
      %39 = dma.done [#allocation3], 128
    $region13: #{tpu_custom_call.1} parent=1 // pred_fallthru
      _
    // Predicated region
    $region14: #{tpu_custom_call.1} parent=1 // pred_check
      _
    $region15: #{tpu_custom_call.1} parent=1 // pred_check_branch
      %41 = sbr.rel (0) target = $region17
    $region16: #{tpu_custom_call.1} parent=1 // pred_region
      %42 = dma.done [#allocation6], 1024
    $region17: #{tpu_custom_call.1} parent=1 // pred_fallthru
      _
    %v44 = vld [vmem:[#allocation2] sm:$0xf]
    %v45 = vld [vmem:[#allocation2 + $0x4] sm:$0xf]
    %v46 = vld [vmem:[#allocation5] sm:$0xf]
    %v47 = vld [vmem:[#allocation5 + $0x4] sm:$0xf]
    %v48 = vld [vmem:[#allocation5 + $0x8] sm:$0xf]
    %v49 = vld [vmem:[#allocation5 + $0xc] sm:$0xf]
    %v50 = vld [vmem:[#allocation5 + $0x10] sm:$0xf]
    %v51 = vld [vmem:[#allocation5 + $0x14] sm:$0xf]
    %v52 = vld [vmem:[#allocation5 + $0x18] sm:$0xf]
    %v53 = vld [vmem:[#allocation5 + $0x1c] sm:$0xf]
    %v54 = vld [vmem:[#allocation5 + $0x20] sm:$0xf]
    %v55 = vld [vmem:[#allocation5 + $0x24] sm:$0xf]
    %v56 = vld [vmem:[#allocation5 + $0x28] sm:$0xf]
    %v57 = vld [vmem:[#allocation5 + $0x2c] sm:$0xf]
    %v58 = vld [vmem:[#allocation5 + $0x30] sm:$0xf]
    %v59 = vld [vmem:[#allocation5 + $0x34] sm:$0xf]
    %v60 = vld [vmem:[#allocation5 + $0x38] sm:$0xf]
    %v61 = vld [vmem:[#allocation5 + $0x3c] sm:$0xf]
    %v64 = vunpack.c.l.b16 %v44
    %v65 = vunpack.c.l.b16 %v45
    %v66 = vpack.c.b16 %v65, %v64
    %v84 = vunpack.c.l.b16 %v46
    %v85 = vunpack.c.l.b16 %v47
    %v86 = vunpack.c.l.b16 %v48
    %v87 = vunpack.c.l.b16 %v49
    %v88 = vunpack.c.l.b16 %v50
    %v89 = vunpack.c.l.b16 %v51
    %v90 = vunpack.c.l.b16 %v52
    %v91 = vunpack.c.l.b16 %v53
    %v92 = vunpack.c.l.b16 %v54
    %v93 = vunpack.c.l.b16 %v55
    %v94 = vunpack.c.l.b16 %v56
    %v95 = vunpack.c.l.b16 %v57
    %v96 = vunpack.c.l.b16 %v58
    %v97 = vunpack.c.l.b16 %v59
    %v98 = vunpack.c.l.b16 %v60
    %v99 = vunpack.c.l.b16 %v61
    %v100 = vpack.c.b16 %v85, %v84
    %v101 = vpack.c.b16 %v87, %v86
    %v102 = vpack.c.b16 %v89, %v88
    %v103 = vpack.c.b16 %v91, %v90
    %v104 = vpack.c.b16 %v93, %v92
    %v105 = vpack.c.b16 %v95, %v94
    %v106 = vpack.c.b16 %v97, %v96
    %v107 = vpack.c.b16 %v99, %v98
    %116 = vmatprep.subr.bf16.mxu0 0
    %117 = vmatpush1.bf16.msra.mxu0 %v100
    %118 = vmatprep.subr.bf16.mxu0 0
    %119 = vmatpush1.bf16.msra.mxu0 %v101
    %120 = vmatprep.subr.bf16.mxu0 0
    %121 = vmatpush1.bf16.msra.mxu0 %v102
    %122 = vmatprep.subr.bf16.mxu0 0
    %123 = vmatpush1.bf16.msra.mxu0 %v103
    %124 = vmatprep.subr.bf16.mxu0 0
    %125 = vmatpush1.bf16.msra.mxu0 %v104
    %126 = vmatprep.subr.bf16.mxu0 0
    %127 = vmatpush1.bf16.msra.mxu0 %v105
    %128 = vmatprep.subr.bf16.mxu0 0
    %129 = vmatpush1.bf16.msra.mxu0 %v106
    %130 = vmatprep.subr.bf16.mxu0 0
    %131 = vmatpush1.bf16.msra.mxu0 %v107
    %132 = vmatprep.subr.bf16.mxu0 0
    %133 = vmatpush1.bf16.msra.mxu0 0
    %134 = vmatprep.subr.bf16.mxu0 0
    %135 = vmatpush1.bf16.msra.mxu0 0
    %136 = vmatprep.subr.bf16.mxu0 0
    %137 = vmatpush1.bf16.msra.mxu0 0
    %138 = vmatprep.subr.bf16.mxu0 0
    %139 = vmatpush1.bf16.msra.mxu0 0
    %140 = vmatprep.subr.bf16.mxu0 0
    %141 = vmatpush1.bf16.msra.mxu0 0
    %142 = vmatprep.subr.bf16.mxu0 0
    %143 = vmatpush1.bf16.msra.mxu0 0
    %144 = vmatprep.subr.bf16.mxu0 0
    %145 = vmatpush1.bf16.msra.mxu0 0
    %146 = vmatprep.subr.bf16.mxu0 0
    %147 = vmatpush1.bf16.msra.mxu0 0
    %148 = vmatprep.mubr.bf16.mxu0 0
    %149 = vmatmul.mubr.bf16.gmra.mrb[0].mxu0 %v66
    %v150 = vpop.f32.mrb[0].mxu0
    %v151 = vadd.f32 0.0, %v150
    %v152 = vpop.f32.mrb[0].mxu0
    %v153 = vpop.f32.mrb[0].mxu0
    %v154 = vadd.f32 0.0, %v153
    %v155 = vpop.f32.mrb[0].mxu0
    %156 = vdwg.mxu0
    %v157 = vpack.c.bf16 %v154, %v151
    %v159 = vunpack.c.l.b16 %v157
    %v160 = vunpack.c.h.b16 %v157
    %v161 = vpack.c.b16 %v159, %v159
    %v162 = vpack.c.b16 %v160, %v160
    %165 = vst [vmem:[#allocation7] sm:$0xf] %v161
    %166 = vst [vmem:[#allocation7 + $0x4] sm:$0xf] %v162
    %v167 = vadd.f32 %v151, %v154
    %v168 = vrot.slane %v167, 4
    %v169 = vadd.f32 %v167, %v168
    %v170 = vrot.slane %v169, 2
    %v171 = vadd.f32 %v169, %v170
    %v172 = vrot.slane %v171, 1
    %v173 = vadd.f32 %v171, %v172
    %v174 = vmul.f32 %v151, %v151
    %v175 = vmul.f32 %v154, %v154
    %v176 = vadd.f32 %v174, %v175
    %v177 = vrot.slane %v176, 4
    %v178 = vadd.f32 %v176, %v177
    %v179 = vrot.slane %v178, 2
    %v180 = vadd.f32 %v178, %v179
    %v181 = vrot.slane %v180, 1
    %v182 = vadd.f32 %v180, %v181
    %vm183 = vcmask 1040384
    %v184 = vsel %vm183, %v173, %v182
    %185 = vst [vmem:[#allocation8] sm:$0x3] %v184
    // Predicated region
    $region18: #{tpu_custom_call.1} parent=1 // pred_check
      _
    $region19: #{tpu_custom_call.1} parent=1 // pred_check_branch
      %187 = sbr.rel (0) target = $region21
    $region20: #{tpu_custom_call.1} parent=1 // pred_region
      %s189 = ssub.s32 128, 128
      %190 = vsyncadd [#allocation4], %s189
      %s191 = sshll.u32 [#allocation7], 4
      %s192 = int_to_ptr.vmem [resolvable:$true] %s191
      %197 = dma.vmem_to_hbm [thread:$0]  %s192, 128, %s2, [#allocation4], 64, 64, 4
    $region21: #{tpu_custom_call.1} parent=1 // pred_fallthru
      _
    // Predicated region
    $region22: #{tpu_custom_call.1} parent=1 // pred_check
      _
    $region23: #{tpu_custom_call.1} parent=1 // pred_check_branch
      %199 = sbr.rel (0) target = $region25
    $region24: #{tpu_custom_call.1} parent=1 // pred_region
      %s201 = ssub.s32 32, 32
      %202 = vsyncadd [#allocation9], %s201
      %s204 = sshll.u32 [#allocation8], 4
      %s205 = int_to_ptr.vmem [resolvable:$true] %s204
      %207 = dma.vmem_to_hbm [thread:$0]  %s205, 32, %s3, [#allocation9]
    $region25: #{tpu_custom_call.1} parent=1 // pred_fallthru
      _
    // Predicated region
    $region26: #{tpu_custom_call.1} parent=1 // pred_check
      _
    $region27: #{tpu_custom_call.1} parent=1 // pred_check_branch
      %209 = sbr.rel (0) target = $region29
    $region28: #{tpu_custom_call.1} parent=1 // pred_region
      %210 = dma.done [#allocation4], 128
    $region29: #{tpu_custom_call.1} parent=1 // pred_fallthru
      _
    // Predicated region
    $region30: #{tpu_custom_call.1} parent=1 // pred_check
      _
    $region31: #{tpu_custom_call.1} parent=1 // pred_check_branch
      %212 = sbr.rel (0) target = $region33
    $region32: #{tpu_custom_call.1} parent=1 // pred_region
      %213 = dma.done [#allocation9], 32
    $region33: #{tpu_custom_call.1} parent=1 // pred_fallthru
      _
    %214 = vsyncpa [#allocation3], 1
    %215 = vsyncpa [#allocation6], 1
    %216 = vsyncpa [#allocation4], 1
    %217 = vsyncpa [#allocation9], 1

</llo_original>
